<compile_context>
chip_gen: v7x
topology: tpu7x:2x2x1
jax: 0.10.0
libtpu: 0.0.40
codegen_flags: <defaults>
</compile_context>

<pallas_src>
import jax
import jax.numpy as jnp
from jax.experimental import pallas as pl
from jax.experimental.pallas import tpu as pltpu

FILL_VAL = -1  # ignore index, same as the torch code


# ----------------------------------------------------------------------------
# hardware / tiling plan
# ----------------------------------------------------------------------------
def _round_up(x, m):
    return ((x + m - 1) // m) * m


def _chip_kind():
    try:
        return jax.devices()[0].device_kind.lower()
    except Exception:
        return ""


def _hw_config():
    kind = _chip_kind()
    if "v7" in kind:
        # 64 MiB physical VMEM, 2 TensorCores: modest tiles, shard rows.
        return {"vmem": 48 * 1024 * 1024, "tn_cap": 256, "tv_cap": 1024,
                "row_parts": 2}
    if ("v5 lite" in kind) or ("v5e" in kind) or ("v6" in kind):
        # 128 MiB physical VMEM, single TensorCore: bigger tiles / limit.
        return {"vmem": 96 * 1024 * 1024, "tn_cap": 512, "tv_cap": 2048,
                "row_parts": 1}
    # unknown generation: conservative
    return {"vmem": 48 * 1024 * 1024, "tn_cap": 256, "tv_cap": 1024,
            "row_parts": 1}


_HW = _hw_config()


def _plan(N, V):
    """Row tile (multiple of 8), vocab tile (multiple of 128), padded extents,
    and the number of row parts for the leading parallel grid axis."""
    tN = min(_HW["tn_cap"], _round_up(N, 8))
    Np = _round_up(N, tN)
    tV = min(_HW["tv_cap"], _round_up(V, 128))
    Vp = _round_up(V, tV)
    NR = Np // tN
    NP = _HW["row_parts"]
    if NR % NP != 0:
        NP = 1
    return tN, tV, Np, Vp, NP


# ----------------------------------------------------------------------------
# Kernel A: online logsumexp over vocab tiles   grid = (NP, NV, NR_per_part)
#   h is VMEM-resident per part; W streamed from HBM once per part.
# ----------------------------------------------------------------------------
def lm_lse(h, w, b, *, tN, tV, NP):
    Np, H = h.shape
    Vp = w.shape[1]
    n_part = Np // NP
    nrp = (Np // tN) // NP
    nv = Vp // tV

    def kernel(h_ref, w_ref, b_ref, lse_ref, m_sc, l_sc):
        v = pl.program_id(1)
        r = pl.program_id(2)
        nvp = pl.num_programs(1)
        row0 = pl.multiple_of(r * tN, tN)
        rows = pl.ds(row0, tN)

        @pl.when(v == 0)
        def _():
            m_sc[rows, :] = jnp.full((tN, 1), -jnp.inf, jnp.float32)
            l_sc[rows, :] = jnp.zeros((tN, 1), jnp.float32)

        # bf16 operands, f32 accumulate on the MXU
        logits = jax.lax.dot_general(
            h_ref[rows, :], w_ref[...], (((1,), (0,)), ((), ())),
            preferred_element_type=jnp.float32) + b_ref[...]

        m_prev = m_sc[rows, :]
        m_new = jnp.maximum(m_prev, jnp.max(logits, axis=-1, keepdims=True))
        l_sc[rows, :] = (l_sc[rows, :] * jnp.exp(m_prev - m_new)
                         + jnp.sum(jnp.exp(logits - m_new), axis=-1,
                                   keepdims=True))
        m_sc[rows, :] = m_new

        @pl.when(v == nvp - 1)
        def _():
            lse_ref[rows, :] = m_sc[rows, :] + jnp.log(l_sc[rows, :])

    return pl.pallas_call(
        kernel,
        grid=(NP, nv, nrp),
        in_specs=[
            pl.BlockSpec((n_part, H), lambda p, v, r: (p, 0)),  # h resident/part
            pl.BlockSpec((H, tV), lambda p, v, r: (0, v)),      # W streamed once
            pl.BlockSpec((1, tV), lambda p, v, r: (0, v)),      # bias
        ],
        out_specs=pl.BlockSpec((n_part, 1), lambda p, v, r: (p, 0)),
        out_shape=jax.ShapeDtypeStruct((Np, 1), jnp.float32),
        scratch_shapes=[
            pltpu.VMEM((n_part, 1), jnp.float32),   # running max
            pltpu.VMEM((n_part, 1), jnp.float32),   # running sum-exp
        ],
        compiler_params=pltpu.CompilerParams(
            dimension_semantics=("parallel", "arbitrary", "arbitrary"),
            vmem_limit_bytes=_HW["vmem"]),
    )(h, w, b)


# ----------------------------------------------------------------------------
# Kernel B: fused backward — dW, db, dh; dlogits never leaves VMEM.
#   grid = (NP, NV, NR_per_part); dW/db are per-part partials summed in XLA.
# ----------------------------------------------------------------------------
def lm_backward(inv_cnt, h, w, b, y, lse, *, tN, tV, NP):
    Np, H = h.shape
    Vp = w.shape[1]
    n_part = Np // NP
    nrp = (Np // tN) // NP
    nv = Vp // tV

    def kernel(inv_cnt_ref, h_ref, w_ref, b_ref, y_ref, lse_ref,
               dw_ref, db_ref, dh_ref):
        v = pl.program_id(1)
        r = pl.program_id(2)
        row0 = pl.multiple_of(r * tN, tN)
        rows = pl.ds(row0, tN)

        h_rows = h_ref[rows, :]
        w_tile = w_ref[...]
        logits = jax.lax.dot_general(
            h_rows, w_tile, (((1,), (0,)), ((), ())),
            preferred_element_type=jnp.float32) + b_ref[...]

        # tile-local iota vs y shifted into tile coordinates (cheap (tN,1) op)
        y_loc = y_ref[...] - v * tV
        col = jax.lax.broadcasted_iota(jnp.int32, logits.shape, 1)
        p_soft = jnp.exp(logits - lse_ref[...])          # softmax, no divide
        scale = (y_ref[...] != FILL_VAL).astype(jnp.float32) * inv_cnt_ref[0, 0]
        dlog = jnp.where(col == y_loc, p_soft - 1.0, p_soft) * scale
        dlog_b = dlog.astype(jnp.bfloat16)

        # dW[:, vtile] = sum_rows h^T @ dlogits (contract over rows, no .T)
        dw_part = jax.lax.dot_general(
            h_rows, dlog_b, (((0,), (0,)), ((), ())),
            preferred_element_type=jnp.float32)
        db_part = jnp.sum(dlog, axis=0, keepdims=True)
        # dh[rows] = sum_vtiles dlogits @ W^T (contract over vocab, no .T)
        dh_tile = jax.lax.dot_general(
            dlog_b, w_tile, (((1,), (1,)), ((), ())),
            preferred_element_type=jnp.float32)

        # first-iteration direct store, then accumulate (no zero-init pass)
        @pl.when(r == 0)
        def _():
            dw_ref[0, :, :] = dw_part
            db_ref[0, :, :] = db_part

        @pl.when(r != 0)
        def _():
            dw_ref[0, :, :] += dw_part
            db_ref[0, :, :] += db_part

        @pl.when(v == 0)
        def _():
            dh_ref[rows, :] = dh_tile

        @pl.when(v != 0)
        def _():
            dh_ref[rows, :] += dh_tile

    return pl.pallas_call(
        kernel,
        grid=(NP, nv, nrp),
        in_specs=[
            pl.BlockSpec(memory_space=pltpu.MemorySpace.SMEM),    # inv_cnt (1,1)
            pl.BlockSpec((n_part, H), lambda p, v, r: (p, 0)),    # h resident/part
            pl.BlockSpec((H, tV), lambda p, v, r: (0, v)),        # W streamed once
            pl.BlockSpec((1, tV), lambda p, v, r: (0, v)),        # bias
            pl.BlockSpec((tN, 1), lambda p, v, r: (p * nrp + r, 0)),  # y
            pl.BlockSpec((tN, 1), lambda p, v, r: (p * nrp + r, 0)),  # lse
        ],
        out_specs=(
            pl.BlockSpec((1, H, tV), lambda p, v, r: (p, 0, v)),  # dW partials
            pl.BlockSpec((1, 1, tV), lambda p, v, r: (p, 0, v)),  # db partials
            pl.BlockSpec((n_part, H), lambda p, v, r: (p, 0)),    # dh resident/part
        ),
        out_shape=(
            jax.ShapeDtypeStruct((NP, H, Vp), jnp.float32),
            jax.ShapeDtypeStruct((NP, 1, Vp), jnp.float32),
            jax.ShapeDtypeStruct((Np, H), jnp.float32),
        ),
        compiler_params=pltpu.CompilerParams(
            dimension_semantics=("parallel", "arbitrary", "arbitrary"),
            vmem_limit_bytes=_HW["vmem"]),
    )(inv_cnt, h, w, b, y, lse)


# ----------------------------------------------------------------------------
# Tiny LM "net": embedding + LM head (stand-in for GPT-2)
# ----------------------------------------------------------------------------
def embed(params, tokens):
    # TODO(synk): embedding gather / dE scatter-add kept in XLA (glue); could be
    # fused via PrefetchScalarGridSpec row gather at GPT-2 scale.
    return jnp.take(params["E"], tokens, axis=0)  # (N, H)


def loss_and_grads(params, x, y):
    tokens = x.reshape(-1).astype(jnp.int32)
    y_flat = y.reshape(-1).astype(jnp.int32)
    h = embed(params, tokens)                              # (N, H) f32
    N, H = h.shape
    V = params["W"].shape[1]
    tN, tV, Np, Vp, NP = _plan(N, V)

    h_b = h.astype(jnp.bfloat16)
    w_b = params["W"].astype(jnp.bfloat16)
    b_f = params["b"].astype(jnp.float32)

    # Pad rows/vocab so shapes tile exactly.  Padded rows use the ignore index;
    # padded vocab columns get a -1e30 bias so they carry no softmax mass.
    h_p = jnp.pad(h_b, ((0, Np - N), (0, 0)))
    y_p = jnp.pad(y_flat, (0, Np - N), constant_values=FILL_VAL).reshape(Np, 1)
    w_p = jnp.pad(w_b, ((0, 0), (0, Vp - V)))
    b_p = jnp.pad(b_f, (0, Vp - V), constant_values=-1e30).reshape(1, Vp)

    # GLOBAL valid-token count (tiling must not change normalization)
    valid = (y_flat != FILL_VAL).astype(jnp.float32)
    cnt = jnp.maximum(jnp.sum(valid), 1.0)
    inv_cnt = (1.0 / cnt).reshape(1, 1).astype(jnp.float32)

    # Kernel A: flash-style per-row logsumexp over vocab tiles.
    lse = lm_lse(h_p, w_p, b_p, tN=tN, tV=tV, NP=NP)       # (Np, 1)

    # Target-logit extraction hoisted out of the kernel (O(N*H) vs O(N*V)).
    y_safe = jnp.where(y_flat == FILL_VAL, 0, y_flat)
    w_cols = jnp.take(w_b, y_safe, axis=1).astype(jnp.float32)   # (H, N)
    t = jnp.sum(h_b.astype(jnp.float32) * w_cols.T, axis=-1) + b_f[y_safe]
    loss = jnp.sum((lse[:N, 0] - t) * valid) * inv_cnt[0, 0]

    # Kernel B: fused backward; dlogits stays in VMEM.
    dW_p, db_p, dh_p = lm_backward(inv_cnt, h_p, w_p, b_p, y_p, lse,
                                   tN=tN, tV=tV, NP=NP)
    dW = jnp.sum(dW_p, axis=0)[:, :V]
    db = jnp.sum(db_p, axis=0)[0, :V]
    dh = dh_p[:N]
    dE = jnp.zeros_like(params["E"]).at[tokens].add(dh)
    return loss, {"E": dE, "W": dW, "b": db}


def clip_grads(grads, max_norm):
    leaves = jax.tree_util.tree_leaves(grads)
    gn = jnp.sqrt(sum(jnp.sum(g * g) for g in leaves))
    scale = jnp.minimum(1.0, max_norm / (gn + 1e-6))
    return jax.tree_util.tree_map(lambda g: g * scale, grads)


# ----------------------------------------------------------------------------
# Meta.forward equivalent
# ----------------------------------------------------------------------------
def meta_forward(meta_params, support_x, support_y, query_x, query_y,
                 *, num_updates, update_lr, meta_lr, max_grad_norm,
                 is_lamol=False, lm_lambda=0.25,
                 query_gen_x=None, query_gen_y=None):
    # fast_model = deepcopy(self.net)
    fast = dict(meta_params)

    # inner loop: num_updates SGD steps on the support set
    for _ in range(num_updates):
        _, grads = loss_and_grads(fast, support_x, support_y)
        grads = clip_grads(grads, max_grad_norm)
        fast = {k: fast[k] - update_lr * grads[k] for k in fast}

    # query loss (+ optional LAMOL LM loss)
    q_loss, q_grads = loss_and_grads(fast, query_x, query_y)
    total_loss = q_loss
    meta_grads = q_grads
    if is_lamol:
        lm_loss, lm_grads = loss_and_grads(fast, query_gen_x, query_gen_y)
        total_loss = q_loss + lm_lambda * lm_loss
        meta_grads = {k: q_grads[k] + lm_lambda * lm_grads[k] for k in q_grads}

    # first-order meta update: copy fast-model grads onto meta params, clip, step
    meta_grads = clip_grads(meta_grads, max_grad_norm)
    # TODO(synk): AdamW + dynamic-loss-scale FP16 optimizer replaced by plain SGD.
    new_meta = {k: meta_params[k] - meta_lr * meta_grads[k] for k in meta_params}

    # TODO(synk): tokenizer-decode error-analysis printing omitted.
    return total_loss, new_meta


# ----------------------------------------------------------------------------
if __name__ == "__main__":
    key = jax.random.PRNGKey(0)
    V, H, B, T = 128, 32, 2, 8     # vocab_size, hidden, batch, seq
    k1, k2, k3, k4, k5, k6 = jax.random.split(key, 6)

    meta_params = {
        "E": jax.random.normal(k1, (V, H), jnp.float32) * 0.02,
        "W": jax.random.normal(k2, (H, V), jnp.float32) * 0.02,
        "b": jnp.zeros((V,), jnp.float32),
    }

    support_x = jax.random.randint(k3, (B, T), 0, V, jnp.int32)
    query_x = jax.random.randint(k4, (B, T), 0, V, jnp.int32)
    support_y = jax.random.randint(k5, (B, T), 0, V, jnp.int32)
    query_y = jax.random.randint(k6, (B, T), 0, V, jnp.int32)
    # padded / ignored target positions (ignore_index = FILL_VAL = -1)
    support_y = support_y.at[:, -2:].set(FILL_VAL)
    query_y = query_y.at[:, -2:].set(FILL_VAL)

    loss, new_meta = meta_forward(
        meta_params, support_x, support_y, query_x, query_y,
        num_updates=2, update_lr=0.1, meta_lr=0.01, max_grad_norm=1.0,
        is_lamol=False, lm_lambda=0.25)

    loss = jax.block_until_ready(loss)
    jax.block_until_ready(new_meta)
    assert jnp.isfinite(loss)
    print("KERNEL_OK")
</pallas_src>

<mosaic_0001>
module attributes {stable_mosaic.version = 11 : i64} {
  func.func @kernel(%arg0: i32, %arg1: i32, %arg2: i32, %arg3: memref<16x32xbf16, #tpu.memory_space<vmem>>, %arg4: memref<32x128xbf16, #tpu.memory_space<vmem>>, %arg5: memref<1x128xf32, #tpu.memory_space<vmem>>, %arg6: memref<16x1xf32, #tpu.memory_space<vmem>>, %arg7: memref<16x1xf32, #tpu.memory_space<vmem>>, %arg8: memref<16x1xf32, #tpu.memory_space<vmem>>) attributes {dimension_semantics = [#tpu.dimension_semantics<parallel>, #tpu.dimension_semantics<arbitrary>, #tpu.dimension_semantics<arbitrary>], iteration_bounds = array<i64: 1, 1, 1>, scalar_prefetch = 0 : i64, scratch_operands = 2 : i64, tpu.core_type = #tpu.core_type<tc>, window_params = [{transform_indices = @transform_0, window_bounds = array<i64: 16, 32>}, {transform_indices = @transform_1, window_bounds = array<i64: 32, 128>}, {transform_indices = @transform_2, window_bounds = array<i64: 1, 128>}, {transform_indices = @transform_3, window_bounds = array<i64: 16, 1>}]} {
    %c16_i32 = arith.constant 16 : i32
    %0 = arith.muli %arg2, %c16_i32 : i32
    %1 = tpu.assume_multiple %0, 16 : i32
    %c0_i32 = arith.constant 0 : i32
    %2 = arith.cmpi eq, %arg1, %c0_i32 : i32
    %3 = arith.extui %2 : i1 to i32
    %c0_i32_0 = arith.constant 0 : i32
    %4 = arith.cmpi ne, %3, %c0_i32_0 : i32
    scf.if %4 {
      %cst_13 = arith.constant 0xFF800000 : f32
      %35 = vector.broadcast %cst_13 : f32 to vector<16x1xf32>
      %36 = arith.index_cast %1 : i32 to index
      %c0_14 = arith.constant 0 : index
      %37 = vector.load %arg7[%36, %c0_14] : memref<16x1xf32, #tpu.memory_space<vmem>>, vector<16x1xf32>
      tpu.vector_store %arg7[%36, %c0_14], %35 {strides = array<i32>} : memref<16x1xf32, #tpu.memory_space<vmem>>, vector<16x1xf32>,
      %cst_15 = arith.constant 0.000000e+00 : f32
      %38 = vector.broadcast %cst_15 : f32 to vector<16x1xf32>
      %39 = arith.index_cast %1 : i32 to index
      %c0_16 = arith.constant 0 : index
      %40 = vector.load %arg8[%39, %c0_16] : memref<16x1xf32, #tpu.memory_space<vmem>>, vector<16x1xf32>
      tpu.vector_store %arg8[%39, %c0_16], %38 {strides = array<i32>} : memref<16x1xf32, #tpu.memory_space<vmem>>, vector<16x1xf32>,
    } else {
    }
    %5 = arith.index_cast %1 : i32 to index
    %c0 = arith.constant 0 : index
    %6 = vector.load %arg3[%5, %c0] : memref<16x32xbf16, #tpu.memory_space<vmem>>, vector<16x32xbf16>
    %c0_1 = arith.constant 0 : index
    %c0_2 = arith.constant 0 : index
    %7 = vector.load %arg4[%c0_1, %c0_2] : memref<32x128xbf16, #tpu.memory_space<vmem>>, vector<32x128xbf16>
    %cst = arith.constant dense<0.000000e+00> : vector<16x128xf32>
    %8 = tpu.matmul %6, %7, %cst {dimension_numbers = #tpu.dot_dimension_numbers<[1], [0], [0], [1], [0, 0, 1, 1], [], []>} : vector<16x32xbf16>, vector<32x128xbf16>, vector<16x128xf32> -> vector<16x128xf32>
    %c0_3 = arith.constant 0 : index
    %c0_4 = arith.constant 0 : index
    %9 = vector.load %arg5[%c0_3, %c0_4] : memref<1x128xf32, #tpu.memory_space<vmem>>, vector<1x128xf32>
    %10 = vector.broadcast %9 : vector<1x128xf32> to vector<16x128xf32>
    %11 = arith.addf %8, %10 : vector<16x128xf32>
    %12 = arith.index_cast %1 : i32 to index
    %c0_5 = arith.constant 0 : index
    %13 = vector.load %arg7[%12, %c0_5] : memref<16x1xf32, #tpu.memory_space<vmem>>, vector<16x1xf32>
    %cst_6 = arith.constant dense<0xFF800000> : vector<16xf32>
    %14 = vector.multi_reduction <maximumf>, %11, %cst_6 [1] : vector<16x128xf32> to vector<16xf32>
    %15 = vector.shape_cast %14 : vector<16xf32> to vector<16x1xf32>
    %16 = arith.maximumf %13, %15 : vector<16x1xf32>
    %17 = arith.index_cast %1 : i32 to index
    %c0_7 = arith.constant 0 : index
    %18 = vector.load %arg8[%17, %c0_7] : memref<16x1xf32, #tpu.memory_space<vmem>>, vector<16x1xf32>
    %19 = arith.subf %13, %16 : vector<16x1xf32>
    %20 = math.exp %19 : vector<16x1xf32>
    %21 = arith.mulf %18, %20 : vector<16x1xf32>
    %22 = vector.broadcast %16 : vector<16x1xf32> to vector<16x128xf32>
    %23 = arith.subf %11, %22 : vector<16x128xf32>
    %24 = math.exp %23 : vector<16x128xf32>
    %cst_8 = arith.constant dense<0.000000e+00> : vector<16xf32>
    %25 = vector.multi_reduction <add>, %24, %cst_8 [1] : vector<16x128xf32> to vector<16xf32>
    %26 = vector.shape_cast %25 : vector<16xf32> to vector<16x1xf32>
    %27 = arith.addf %21, %26 : vector<16x1xf32>
    %28 = arith.index_cast %1 : i32 to index
    %c0_9 = arith.constant 0 : index
    %29 = vector.load %arg8[%28, %c0_9] : memref<16x1xf32, #tpu.memory_space<vmem>>, vector<16x1xf32>
    tpu.vector_store %arg8[%28, %c0_9], %27 {strides = array<i32>} : memref<16x1xf32, #tpu.memory_space<vmem>>, vector<16x1xf32>,
    %30 = arith.index_cast %1 : i32 to index
    %c0_10 = arith.constant 0 : index
    %31 = vector.load %arg7[%30, %c0_10] : memref<16x1xf32, #tpu.memory_space<vmem>>, vector<16x1xf32>
    tpu.vector_store %arg7[%30, %c0_10], %16 {strides = array<i32>} : memref<16x1xf32, #tpu.memory_space<vmem>>, vector<16x1xf32>,
    %c0_i32_11 = arith.constant 0 : i32
    %32 = arith.cmpi eq, %arg1, %c0_i32_11 : i32
    %33 = arith.extui %32 : i1 to i32
    %c0_i32_12 = arith.constant 0 : i32
    %34 = arith.cmpi ne, %33, %c0_i32_12 : i32
    scf.if %34 {
      %35 = arith.index_cast %1 : i32 to index
      %c0_13 = arith.constant 0 : index
      %36 = vector.load %arg7[%35, %c0_13] : memref<16x1xf32, #tpu.memory_space<vmem>>, vector<16x1xf32>
      %37 = arith.index_cast %1 : i32 to index
      %c0_14 = arith.constant 0 : index
      %38 = vector.load %arg8[%37, %c0_14] : memref<16x1xf32, #tpu.memory_space<vmem>>, vector<16x1xf32>
      %39 = math.log %38 : vector<16x1xf32>
      %40 = arith.addf %36, %39 : vector<16x1xf32>
      %41 = arith.index_cast %1 : i32 to index
      %c0_15 = arith.constant 0 : index
      %42 = vector.load %arg6[%41, %c0_15] : memref<16x1xf32, #tpu.memory_space<vmem>>, vector<16x1xf32>
      tpu.vector_store %arg6[%41, %c0_15], %40 {strides = array<i32>} : memref<16x1xf32, #tpu.memory_space<vmem>>, vector<16x1xf32>,
    } else {
    }
    return
  }
  func.func @transform_0(%arg0: i32, %arg1: i32, %arg2: i32) -> (i32, i32) {
    %c0_i32 = arith.constant 0 : i32
    %c0_i32_0 = arith.constant 0 : i32
    return %arg0, %c0_i32 : i32, i32
  }
  func.func @transform_1(%arg0: i32, %arg1: i32, %arg2: i32) -> (i32, i32) {
    %c0_i32 = arith.constant 0 : i32
    %c0_i32_0 = arith.constant 0 : i32
    return %c0_i32, %arg1 : i32, i32
  }
  func.func @transform_2(%arg0: i32, %arg1: i32, %arg2: i32) -> (i32, i32) {
    %c0_i32 = arith.constant 0 : i32
    %c0_i32_0 = arith.constant 0 : i32
    return %c0_i32, %arg1 : i32, i32
  }
  func.func @transform_3(%arg0: i32, %arg1: i32, %arg2: i32) -> (i32, i32) {
    %c0_i32 = arith.constant 0 : i32
    %c0_i32_0 = arith.constant 0 : i32
    return %arg0, %c0_i32 : i32, i32
  }
}

</mosaic_0001>

<llo_original>
// kernel: tpu_custom_call.1
$region0: #{tpu_custom_call.1}
  #allocation0 [shape = 'u32[]', space=smem, size = 0x4, offset = 0x4, fixed_abs, tag = 'smem constant byte address 0x4 - core index']
  #allocation1 [shape = 'u32[144,128]{1,0:T(1,128)}', space=vmem, size = 0x12000, scoped, tag = 'internal scratch']
  #allocation2 [shape = 'f32[16,1]{1,0:T(8,128)}', space=vmem, size = 0x2000, scoped, tag = 'scratch operand']
  #allocation3 [shape = 'f32[16,1]{1,0:T(8,128)}', space=vmem, size = 0x2000, scoped, tag = 'scratch operand']
  %s0 = inlined_call_operand.hbm [shape: bf16[16,32], index: 0, kind: input, shape index: {}]
  %s1 = inlined_call_operand.hbm [shape: bf16[32,128], index: 1, kind: input, shape index: {}]
  %s2 = inlined_call_operand.vmem [shape: f32[1,128], index: 2, kind: input, shape index: {}]
  %s3 = inlined_call_operand.vmem [shape: f32[16,1], index: 3, kind: output, shape index: {}]
  %s4 = sld [smem:[#allocation0]]
  $region38: #{tpu_custom_call.1} parent=0
    _
  %s6 = ssub.s32 1, %s4
  %s7 = scalar_select 0, %s6, %s4
  $region1: #{tpu_custom_call.1} parent=0
    #allocation4 [shape = 'u8[4096]{0}', space=vmem, size = 0x1000, scoped, tag = 'input window, operand 0, single buffered']
    #allocation5 [shape = 's32[1]{0}', space=sflag, size = 0x4, scoped, tag = 'scoped memory for tpu_custom_call.1']
    #allocation6 [shape = 'u8[8192]{0}', space=vmem, size = 0x2000, scoped, tag = 'input window, operand 1, single buffered']
    #allocation7 [shape = 's32[1]{0}', space=sflag, size = 0x4, scoped, tag = 'scoped memory for tpu_custom_call.1']
    %8 = vsyncpa [#allocation5], 0
    %9 = vsyncpa [#allocation7], 0
    // Predicated region
    $region2: #{tpu_custom_call.1} parent=1 // pred_check
      _
    $region3: #{tpu_custom_call.1} parent=1 // pred_check_branch
      %11 = sbr.rel (0) target = $region5
    $region4: #{tpu_custom_call.1} parent=1 // pred_region
      %s13 = ssub.s32 128, 128
      %14 = vsyncadd [#allocation5], %s13
      %s15 = sshll.u32 [#allocation4], 4
      %s16 = int_to_ptr.vmem [resolvable:$true] %s15
      %21 = dma.hbm_to_vmem [thread:$0]  %s0, 128, %s16, [#allocation5], 64, 64, 4
    $region5: #{tpu_custom_call.1} parent=1 // pred_fallthru
      _
    // Predicated region
    $region6: #{tpu_custom_call.1} parent=1 // pred_check
      _
    $region7: #{tpu_custom_call.1} parent=1 // pred_check_branch
      %23 = sbr.rel (0) target = $region9
    $region8: #{tpu_custom_call.1} parent=1 // pred_region
      %s25 = ssub.s32 256, 256
      %26 = vsyncadd [#allocation7], %s25
      %s27 = sshll.u32 [#allocation6], 4
      %s28 = int_to_ptr.vmem [resolvable:$true] %s27
      %33 = dma.hbm_to_vmem [thread:$0]  %s1, 256, %s28, [#allocation7], 64, 64, 4
    $region9: #{tpu_custom_call.1} parent=1 // pred_fallthru
      _
    // Predicated region
    $region10: #{tpu_custom_call.1} parent=1 // pred_check
      _
    $region11: #{tpu_custom_call.1} parent=1 // pred_check_branch
      %35 = sbr.rel (0) target = $region13
    $region12: #{tpu_custom_call.1} parent=1 // pred_region
      _
    $region13: #{tpu_custom_call.1} parent=1 // pred_fallthru
      _
    // Predicated region
    $region14: #{tpu_custom_call.1} parent=1 // pred_check
      _
    $region15: #{tpu_custom_call.1} parent=1 // pred_check_branch
      %37 = sbr.rel (0) target = $region17
    $region16: #{tpu_custom_call.1} parent=1 // pred_region
      %38 = dma.done [#allocation5], 128
    $region17: #{tpu_custom_call.1} parent=1 // pred_fallthru
      _
    // Predicated region
    $region18: #{tpu_custom_call.1} parent=1 // pred_check
      _
    $region19: #{tpu_custom_call.1} parent=1 // pred_check_branch
      %40 = sbr.rel (0) target = $region21
    $region20: #{tpu_custom_call.1} parent=1 // pred_region
      %41 = dma.done [#allocation7], 256
    $region21: #{tpu_custom_call.1} parent=1 // pred_fallthru
      _
    %s43 = smul.u32 0, 16
    %p44 = scmp.eq.s32.totalorder 0, 0
    // Predicated region
    $region22: #{tpu_custom_call.1} parent=1 // pred_check
      %p45 = pneg %p44
    $region23: #{tpu_custom_call.1} parent=1 // pred_check_branch
      %47 = sbr.rel (%p45) target = $region25
    $region24: #{tpu_custom_call.1} parent=1 // pred_region
      %s48 = scalar_lea.vmem [#allocation2], %s43
      %vm49 = vcmask 7168
      %50 = vst.msk [vmem:[%s48] sm:$0xff] %vm49, -inf
      %51 = vst.msk [vmem:[%s48 + $0x8] sm:$0xff] %vm49, -inf
      %s52 = scalar_lea.vmem [#allocation3], %s43
      %53 = vst.msk [vmem:[%s52] sm:$0xff] %vm49, 0.0
      %54 = vst.msk [vmem:[%s52 + $0x8] sm:$0xff] %vm49, 0.0
    $region25: #{tpu_custom_call.1} parent=1 // pred_fallthru
      _
    %s55 = sshra.s32 %s43, 3
    %s56 = sand.u32 %s43, 7
    %s57 = smul.addr %s55, 4
    %s58 = scalar_lea.vmem [#allocation4], %s57
    %v59 = vld [vmem:[%s58] sm:$0xf]
    %v60 = vld [vmem:[%s58 + $0x4] sm:$0xf]
    %v61 = vld [vmem:[#allocation6] sm:$0xf]
    %v62 = vld [vmem:[#allocation6 + $0x4] sm:$0xf]
    %v63 = vld [vmem:[#allocation6 + $0x8] sm:$0xf]
    %v64 = vld [vmem:[#allocation6 + $0xc] sm:$0xf]
    %v65 = vld [vmem:[%s2] sm:$0x1]
    %v67 = vlaneseq
    %v68 = vshrl.u32 %v67, 7
    %v69 = vsub.s32 0, %v68
    %v70 = vrot.slane %v65, %v69
    %v74 = vunpack.c.l.b16 %v59
    %v75 = vunpack.c.l.b16 %v60
    %v76 = vpack.c.b16 %v75, %v74
    %v81 = vunpack.c.l.b16 %v61
    %v82 = vunpack.c.l.b16 %v62
    %v83 = vunpack.c.l.b16 %v63
    %v84 = vunpack.c.l.b16 %v64
    %v85 = vpack.c.b16 %v82, %v81
    %v86 = vpack.c.b16 %v84, %v83
    %vm89 = vcmask 261120
    %v91 = vsel %vm89, %v76, 0
    %93 = vmatprep.subr.bf16.mxu0 0
    %94 = vmatpush1.bf16.msra.mxu0 %v85
    %95 = vmatprep.subr.bf16.mxu0 0
    %96 = vmatpush1.bf16.msra.mxu0 %v86
    %97 = vmatprep.subr.bf16.mxu0 0
    %98 = vmatpush1.bf16.msra.mxu0 0
    %99 = vmatprep.subr.bf16.mxu0 0
    %100 = vmatpush1.bf16.msra.mxu0 0
    %101 = vmatprep.subr.bf16.mxu0 0
    %102 = vmatpush1.bf16.msra.mxu0 0
    %103 = vmatprep.subr.bf16.mxu0 0
    %104 = vmatpush1.bf16.msra.mxu0 0
    %105 = vmatprep.subr.bf16.mxu0 0
    %106 = vmatpush1.bf16.msra.mxu0 0
    %107 = vmatprep.subr.bf16.mxu0 0
    %108 = vmatpush1.bf16.msra.mxu0 0
    %109 = vmatprep.subr.bf16.mxu0 0
    %110 = vmatpush1.bf16.msra.mxu0 0
    %111 = vmatprep.subr.bf16.mxu0 0
    %112 = vmatpush1.bf16.msra.mxu0 0
    %113 = vmatprep.subr.bf16.mxu0 0
    %114 = vmatpush1.bf16.msra.mxu0 0
    %115 = vmatprep.subr.bf16.mxu0 0
    %116 = vmatpush1.bf16.msra.mxu0 0
    %117 = vmatprep.subr.bf16.mxu0 0
    %118 = vmatpush1.bf16.msra.mxu0 0
    %119 = vmatprep.subr.bf16.mxu0 0
    %120 = vmatpush1.bf16.msra.mxu0 0
    %121 = vmatprep.subr.bf16.mxu0 0
    %122 = vmatpush1.bf16.msra.mxu0 0
    %123 = vmatprep.subr.bf16.mxu0 0
    %124 = vmatpush1.bf16.msra.mxu0 0
    %125 = vmatprep.mubr.bf16.mxu0 0
    %126 = vmatmul.mubr.bf16.gmra.mrb[0].mxu0 %v91
    %v127 = vpop.f32.mrb[0].mxu0
    %v128 = vadd.f32 %v70, %v127
    %v129 = vpop.f32.mrb[0].mxu0
    %v130 = vpop.f32.mrb[0].mxu0
    %v131 = vadd.f32 %v70, %v130
    %v132 = vpop.f32.mrb[0].mxu0
    %133 = vdwg.mxu0
    %s134 = scalar_lea.vmem [#allocation2], %s43
    %v135 = vld [vmem:[%s134] sm:$0xff]
    %v136 = vld [vmem:[%s134 + $0x8] sm:$0xff]
    %137 = vmax.xlane.f32.xlu0 %v128
    %v138 = vpop.xlane.xlu0 %137
    %139 = vmax.xlane.f32.xlu0 %v131
    %v140 = vpop.xlane.xlu0 %139
    %v141 = vmax.f32 %v135, %v138
    %v142 = vmax.f32 %v136, %v140
    %s143 = scalar_lea.vmem [#allocation3], %s43
    %v144 = vld [vmem:[%s143] sm:$0xff]
    %v145 = vld [vmem:[%s143 + $0x8] sm:$0xff]
    %v146 = vsub.f32 %v135, %v141
    %v147 = vsub.f32 %v136, %v142
    %v148 = vmul.f32 %v146, 1.442695
    %v149 = vpow.pop %v148
    %v150 = vmul.f32 %v147, 1.442695
    %v151 = vpow.pop %v150
    %v152 = vmul.f32 %v144, %v149
    %v153 = vmul.f32 %v145, %v151
    %155 = vset.pattern.permute.xlu0 0
    %156 = vperm.xlu0 %155, %v141
    %v157 = vpop.permute.xlu0 %156
    %160 = vset.pattern.permute.xlu0 0
    %161 = vperm.xlu0 %160, %v142
    %v162 = vpop.permute.xlu0 %161
    %v164 = vsub.f32 %v128, %v157
    %v165 = vsub.f32 %v131, %v162
    %v166 = vmul.f32 %v164, 1.442695
    %v167 = vpow.pop %v166
    %v168 = vmul.f32 %v165, 1.442695
    %v169 = vpow.pop %v168
    %170 = vadd.xlane.f32.xlu0 %v167
    %v171 = vpop.xlane.xlu0 %170
    %172 = vadd.xlane.f32.xlu0 %v169
    %v173 = vpop.xlane.xlu0 %172
    %v174 = vadd.f32 %v152, %v171
    %v175 = vadd.f32 %v153, %v173
    %vm176 = vcmask 7168
    %177 = vst.msk [vmem:[%s143] sm:$0xff] %vm176, %v174
    %178 = vst.msk [vmem:[%s143 + $0x8] sm:$0xff] %vm176, %v175
    %179 = vst.msk [vmem:[%s134] sm:$0xff] %vm176, %v141
    %180 = vst.msk [vmem:[%s134 + $0x8] sm:$0xff] %vm176, %v142
    // Predicated region
    $region26: #{tpu_custom_call.1} parent=1 // pred_check
      %p181 = pneg %p44
    $region27: #{tpu_custom_call.1} parent=1 // pred_check_branch
      %183 = sbr.rel (%p181) target = $region29
    $region28: #{tpu_custom_call.1} parent=1 // pred_region
      %v184 = vld [vmem:[%s134] sm:$0xff]
      %v185 = vld [vmem:[%s134 + $0x8] sm:$0xff]
      %v186 = vld [vmem:[%s143] sm:$0xff]
      %v187 = vld [vmem:[%s143 + $0x8] sm:$0xff]
      %v188 = vlog2.pop %v186
      %v189 = vmul.f32 %v188, 0.6931472
      %v190 = vlog2.pop %v187
      %v191 = vmul.f32 %v190, 0.6931472
      %v192 = vadd.f32 %v184, %v189
      %v193 = vadd.f32 %v185, %v191
      %s194 = scalar_lea.vmem %s3, %s43
      %195 = vst.msk [vmem:[%s194] sm:$0xff] %vm176, %v192
      %196 = vst.msk [vmem:[%s194 + $0x8] sm:$0xff] %vm176, %v193
    $region29: #{tpu_custom_call.1} parent=1 // pred_fallthru
      _
    // Predicated region
    $region30: #{tpu_custom_call.1} parent=1 // pred_check
      _
    $region31: #{tpu_custom_call.1} parent=1 // pred_check_branch
      %198 = sbr.rel (0) target = $region33
    $region32: #{tpu_custom_call.1} parent=1 // pred_region
      _
    $region33: #{tpu_custom_call.1} parent=1 // pred_fallthru
      _
    // Predicated region
    $region34: #{tpu_custom_call.1} parent=1 // pred_check
      _
    $region35: #{tpu_custom_call.1} parent=1 // pred_check_branch
      %200 = sbr.rel (0) target = $region37
    $region36: #{tpu_custom_call.1} parent=1 // pred_region
      _
    $region37: #{tpu_custom_call.1} parent=1 // pred_fallthru
      _
    %201 = vsyncpa [#allocation5], 1
    %202 = vsyncpa [#allocation7], 1

</llo_original>
